<compile_context>
chip_gen: v7x
topology: tpu7x:2x2x1
jax: 0.10.0
libtpu: 0.0.40
codegen_flags: <defaults>
</compile_context>

<pallas_src>
import functools

import jax
import jax.numpy as jnp
from jax.experimental import pallas as pl
from jax.experimental.pallas import tpu as pltpu


def _channel_squeeze_kernel(x_ref, w1_ref, t1_ref, w2_ref, t2_ref, o_ref):
    # x_ref:  (1, C, T)       tile of one image: channels x spatial-lane tile
    # w1_ref: (C_mid, C)      conv1 weight with BN1 scale folded in
    # t1_ref: (C_mid, 1)      folded BN1 shift (conv1 bias folded in)
    # w2_ref: (C_mid, C_mid)  conv2 weight with BN2 scale folded in
    # t2_ref: (C_mid, 1)      folded BN2 shift
    # o_ref:  (1, C_mid, T)
    x = x_ref[0]                                               # (C, T)

    h = jnp.dot(w1_ref[...], x, preferred_element_type=jnp.float32)
    h = jnp.maximum(h + t1_ref[...], 0.0)                      # BN shift + ReLU

    y = jnp.dot(w2_ref[...], h.astype(w2_ref.dtype),
                preferred_element_type=jnp.float32)
    y = jnp.maximum(y + t2_ref[...], 0.0)                      # BN shift + ReLU

    o_ref[0] = y.astype(o_ref.dtype)


def channel_squeeze_forward(x_nchw, params, *, hw_tile=None, compute_dtype=None,
                            eps=1e-5):
    """x_nchw: (N, C, H, W).  Returns (N, C // r, H, W) in x's dtype."""
    N, C, H, W = x_nchw.shape
    HW = H * W

    w1 = params["w1"]          # (C_mid, C)   1x1 conv weight (kernel dims squeezed)
    b1 = params["b1"]          # (C_mid,)
    g1, be1, m1, v1 = params["bn1"]
    w2 = params["w2"]          # (C_mid, C_mid)
    b2 = params["b2"]
    g2, be2, m2, v2 = params["bn2"]
    C_mid = w1.shape[0]

    # Fold inference-mode BN + conv bias:  y = scale * (conv(x) + b) + shift'
    #   scale = gamma / sqrt(var + eps);  shift = beta + scale * (b - mean)
    # The multiplicative scale distributes over the matmul, so fold it into W.
    scale1 = g1 / jnp.sqrt(v1 + eps)
    shift1 = be1 + scale1 * (b1 - m1)
    scale2 = g2 / jnp.sqrt(v2 + eps)
    shift2 = be2 + scale2 * (b2 - m2)

    dt = compute_dtype if compute_dtype is not None else x_nchw.dtype
    # Optional bf16 path for bandwidth-bound deployments: pass compute_dtype=bf16;
    # matmul still accumulates in f32 via preferred_element_type.
    w1f = (scale1[:, None] * w1).astype(dt)                    # (C_mid, C)
    w2f = (scale2[:, None] * w2).astype(dt)                    # (C_mid, C_mid)
    t1 = shift1.reshape(C_mid, 1).astype(jnp.float32)
    t2 = shift2.reshape(C_mid, 1).astype(jnp.float32)

    # NCHW -> (N, C, HW): a pure reshape of contiguous memory (no HBM pass).
    x3 = x_nchw.reshape(N, C, HW).astype(dt)

    # Lane-dense spatial tile.
    if hw_tile is None:
        if HW % 128 == 0:
            hw_tile = min(HW, 2048)
        else:
            # Full-extent lane block keeps the (8,128) rule satisfied.
            # TODO(synk): pad HW up to a multiple of 128 for very large, odd HW.
            hw_tile = HW
    num_hw_tiles = pl.cdiv(HW, hw_tile)

    # VMEM budget: double-buffered in/out tiles + (double-buffered) weights,
    # with 2x headroom; cap below v7x's 64 MiB physical VMEM.
    itemsize = jnp.dtype(dt).itemsize
    tile_bytes = 2 * hw_tile * (C * itemsize + C_mid * jnp.dtype(x_nchw.dtype).itemsize)
    w_bytes = 2 * ((C * C_mid + C_mid * C_mid) * itemsize + 2 * C_mid * 4)
    vmem_limit = int(min(48 * 2**20, max(2 * (tile_bytes + w_bytes), 4 * 2**20)))

    full = lambda n, t: (0, 0)

    out = pl.pallas_call(
        _channel_squeeze_kernel,
        out_shape=jax.ShapeDtypeStruct((N, C_mid, HW), x_nchw.dtype),
        grid_spec=pltpu.PrefetchScalarGridSpec(
            num_scalar_prefetch=0,
            grid=(N, num_hw_tiles),
            in_specs=[
                pl.BlockSpec((1, C, hw_tile), lambda n, t: (n, 0, t)),   # x tile
                pl.BlockSpec((C_mid, C), full),                          # w1 (scale folded)
                pl.BlockSpec((C_mid, 1), full),                          # shift1
                pl.BlockSpec((C_mid, C_mid), full),                      # w2 (scale folded)
                pl.BlockSpec((C_mid, 1), full),                          # shift2
            ],
            out_specs=pl.BlockSpec((1, C_mid, hw_tile), lambda n, t: (n, 0, t)),
        ),
        compiler_params=pltpu.CompilerParams(
            dimension_semantics=("parallel", "parallel"),
            vmem_limit_bytes=vmem_limit),
    )(x3, w1f, t1, w2f, t2)

    # (N, C_mid, HW) -> (N, C_mid, H, W): free reshape, still NCHW.
    return out.reshape(N, C_mid, H, W)


def init_params(key, in_channels, r=4):
    c_mid = in_channels // r
    ks = jax.random.split(key, 8)
    w1 = jax.random.normal(ks[0], (c_mid, in_channels), jnp.float32) * 0.1
    b1 = jax.random.normal(ks[1], (c_mid,), jnp.float32) * 0.05
    w2 = jax.random.normal(ks[2], (c_mid, c_mid), jnp.float32) * 0.1
    b2 = jax.random.normal(ks[3], (c_mid,), jnp.float32) * 0.05
    # BatchNorm params (gamma, beta, running_mean, running_var) — inference mode.
    g1 = 1.0 + 0.1 * jax.random.normal(ks[4], (c_mid,), jnp.float32)
    be1 = 0.05 * jax.random.normal(ks[5], (c_mid,), jnp.float32)
    m1 = 0.02 * jax.random.normal(ks[6], (c_mid,), jnp.float32)
    v1 = 1.0 + 0.1 * jnp.abs(jax.random.normal(ks[7], (c_mid,), jnp.float32))
    g2 = jnp.ones((c_mid,), jnp.float32)
    be2 = jnp.zeros((c_mid,), jnp.float32)
    m2 = jnp.zeros((c_mid,), jnp.float32)
    v2 = jnp.ones((c_mid,), jnp.float32)
    return {
        "w1": w1, "b1": b1, "bn1": (g1, be1, m1, v1),
        "w2": w2, "b2": b2, "bn2": (g2, be2, m2, v2),
    }


def reference_forward(x_nchw, params, eps=1e-5):
    """Pure-JAX reference (same math as the PyTorch module, inference BN)."""
    w1, b1 = params["w1"], params["b1"]
    g1, be1, m1, v1 = params["bn1"]
    w2, b2 = params["w2"], params["b2"]
    g2, be2, m2, v2 = params["bn2"]
    h = jnp.einsum("nchw,oc->nohw", x_nchw, w1) + b1[None, :, None, None]
    h = (h - m1[None, :, None, None]) / jnp.sqrt(v1 + eps)[None, :, None, None]
    h = h * g1[None, :, None, None] + be1[None, :, None, None]
    h = jnp.maximum(h, 0.0)
    y = jnp.einsum("nchw,oc->nohw", h, w2) + b2[None, :, None, None]
    y = (y - m2[None, :, None, None]) / jnp.sqrt(v2 + eps)[None, :, None, None]
    y = y * g2[None, :, None, None] + be2[None, :, None, None]
    return jnp.maximum(y, 0.0)


if __name__ == "__main__":
    key = jax.random.PRNGKey(0)
    k_x, k_p = jax.random.split(key)

    N, C, H, W, r = 2, 16, 16, 16, 4          # HW = 256 lanes per image
    x = jax.random.normal(k_x, (N, C, H, W), jnp.float32)
    params = init_params(k_p, C, r)

    fwd = jax.jit(functools.partial(channel_squeeze_forward))
    out = jax.block_until_ready(fwd(x, params))

    ref = reference_forward(x, params)
    assert out.shape == (N, C // r, H, W)
    assert jnp.allclose(out, ref, atol=1e-4, rtol=1e-4), "mismatch vs reference"

    print("KERNEL_OK")
</pallas_src>

<mosaic_0001>
module attributes {stable_mosaic.version = 11 : i64} {
  func.func @_channel_squeeze_kernel(%arg0: i32, %arg1: i32, %arg2: memref<1x16x256xf32, #tpu.memory_space<vmem>>, %arg3: memref<4x16xf32, #tpu.memory_space<vmem>>, %arg4: memref<4x1xf32, #tpu.memory_space<vmem>>, %arg5: memref<4x4xf32, #tpu.memory_space<vmem>>, %arg6: memref<4x1xf32, #tpu.memory_space<vmem>>, %arg7: memref<1x4x256xf32, #tpu.memory_space<vmem>>) attributes {dimension_semantics = [#tpu.dimension_semantics<parallel>, #tpu.dimension_semantics<parallel>], iteration_bounds = array<i64: 2, 1>, scalar_prefetch = 0 : i64, scratch_operands = 0 : i64, tpu.core_type = #tpu.core_type<tc>, window_params = [{transform_indices = @transform_0, window_bounds = array<i64: 1, 16, 256>}, {pipeline_mode = #tpu.pipeline_mode<synchronous>, transform_indices = @transform_1, window_bounds = array<i64: 4, 16>}, {pipeline_mode = #tpu.pipeline_mode<synchronous>, transform_indices = @transform_2, window_bounds = array<i64: 4, 1>}, {pipeline_mode = #tpu.pipeline_mode<synchronous>, transform_indices = @transform_3, window_bounds = array<i64: 4, 4>}, {pipeline_mode = #tpu.pipeline_mode<synchronous>, transform_indices = @transform_4, window_bounds = array<i64: 4, 1>}, {transform_indices = @transform_5, window_bounds = array<i64: 1, 4, 256>}]} {
    %c0 = arith.constant 0 : index
    %c0_0 = arith.constant 0 : index
    %c0_1 = arith.constant 0 : index
    %0 = vector.load %arg2[%c0, %c0_0, %c0_1] : memref<1x16x256xf32, #tpu.memory_space<vmem>>, vector<1x16x256xf32>
    %1 = vector.shape_cast %0 : vector<1x16x256xf32> to vector<16x256xf32>
    %c0_2 = arith.constant 0 : index
    %c0_3 = arith.constant 0 : index
    %2 = vector.load %arg3[%c0_2, %c0_3] : memref<4x16xf32, #tpu.memory_space<vmem>>, vector<4x16xf32>
    %cst = arith.constant dense<0.000000e+00> : vector<4x256xf32>
    %3 = tpu.matmul %2, %1, %cst {dimension_numbers = #tpu.dot_dimension_numbers<[1], [0], [0], [1], [0, 0, 1, 1], [], []>} : vector<4x16xf32>, vector<16x256xf32>, vector<4x256xf32> -> vector<4x256xf32>
    %c0_4 = arith.constant 0 : index
    %c0_5 = arith.constant 0 : index
    %4 = vector.load %arg4[%c0_4, %c0_5] : memref<4x1xf32, #tpu.memory_space<vmem>>, vector<4x1xf32>
    %5 = vector.broadcast %4 : vector<4x1xf32> to vector<4x256xf32>
    %6 = arith.addf %3, %5 : vector<4x256xf32>
    %cst_6 = arith.constant 0.000000e+00 : f32
    %7 = vector.broadcast %cst_6 : f32 to vector<4x256xf32>
    %8 = arith.maximumf %6, %7 : vector<4x256xf32>
    %c0_7 = arith.constant 0 : index
    %c0_8 = arith.constant 0 : index
    %9 = vector.load %arg5[%c0_7, %c0_8] : memref<4x4xf32, #tpu.memory_space<vmem>>, vector<4x4xf32>
    %cst_9 = arith.constant dense<0.000000e+00> : vector<4x256xf32>
    %10 = tpu.matmul %9, %8, %cst_9 {dimension_numbers = #tpu.dot_dimension_numbers<[1], [0], [0], [1], [0, 0, 1, 1], [], []>} : vector<4x4xf32>, vector<4x256xf32>, vector<4x256xf32> -> vector<4x256xf32>
    %c0_10 = arith.constant 0 : index
    %c0_11 = arith.constant 0 : index
    %11 = vector.load %arg6[%c0_10, %c0_11] : memref<4x1xf32, #tpu.memory_space<vmem>>, vector<4x1xf32>
    %12 = vector.broadcast %11 : vector<4x1xf32> to vector<4x256xf32>
    %13 = arith.addf %10, %12 : vector<4x256xf32>
    %cst_12 = arith.constant 0.000000e+00 : f32
    %14 = vector.broadcast %cst_12 : f32 to vector<4x256xf32>
    %15 = arith.maximumf %13, %14 : vector<4x256xf32>
    %c0_13 = arith.constant 0 : index
    %c0_14 = arith.constant 0 : index
    %c0_15 = arith.constant 0 : index
    %16 = vector.load %arg7[%c0_13, %c0_14, %c0_15] : memref<1x4x256xf32, #tpu.memory_space<vmem>>, vector<1x4x256xf32>
    %17 = vector.shape_cast %16 : vector<1x4x256xf32> to vector<4x256xf32>
    %18 = vector.shape_cast %15 : vector<4x256xf32> to vector<1x4x256xf32>
    tpu.vector_store %arg7[%c0_13, %c0_14, %c0_15], %18 {strides = array<i32>} : memref<1x4x256xf32, #tpu.memory_space<vmem>>, vector<1x4x256xf32>,
    return
  }
  func.func @transform_0(%arg0: i32, %arg1: i32) -> (i32, i32, i32) {
    %c0_i32 = arith.constant 0 : i32
    %c0_i32_0 = arith.constant 0 : i32
    return %arg0, %c0_i32, %arg1 : i32, i32, i32
  }
  func.func @transform_1(%arg0: i32, %arg1: i32) -> (i32, i32) {
    %c0_i32 = arith.constant 0 : i32
    %c0_i32_0 = arith.constant 0 : i32
    %c0_i32_1 = arith.constant 0 : i32
    return %c0_i32, %c0_i32_0 : i32, i32
  }
  func.func @transform_2(%arg0: i32, %arg1: i32) -> (i32, i32) {
    %c0_i32 = arith.constant 0 : i32
    %c0_i32_0 = arith.constant 0 : i32
    %c0_i32_1 = arith.constant 0 : i32
    return %c0_i32, %c0_i32_0 : i32, i32
  }
  func.func @transform_3(%arg0: i32, %arg1: i32) -> (i32, i32) {
    %c0_i32 = arith.constant 0 : i32
    %c0_i32_0 = arith.constant 0 : i32
    %c0_i32_1 = arith.constant 0 : i32
    return %c0_i32, %c0_i32_0 : i32, i32
  }
  func.func @transform_4(%arg0: i32, %arg1: i32) -> (i32, i32) {
    %c0_i32 = arith.constant 0 : i32
    %c0_i32_0 = arith.constant 0 : i32
    %c0_i32_1 = arith.constant 0 : i32
    return %c0_i32, %c0_i32_0 : i32, i32
  }
  func.func @transform_5(%arg0: i32, %arg1: i32) -> (i32, i32, i32) {
    %c0_i32 = arith.constant 0 : i32
    %c0_i32_0 = arith.constant 0 : i32
    return %arg0, %c0_i32, %arg1 : i32, i32, i32
  }
}

</mosaic_0001>

<llo_original>
// kernel: channel_squeeze_forward.1
$region0: #{channel_squeeze_forward.1}
  #allocation0 [shape = 'u32[]', space=smem, size = 0x4, offset = 0x4, fixed_abs, tag = 'smem constant byte address 0x4 - core index']
  #allocation1 [shape = 'u32[144,128]{1,0:T(1,128)}', space=vmem, size = 0x12000, scoped, tag = 'internal scratch']
  %s0 = inlined_call_operand.vmem [shape: f32[2,16,256], index: 0, kind: input, shape index: {}]
  %s1 = inlined_call_operand.vmem [shape: f32[4,16], index: 1, kind: input, shape index: {}]
  %s2 = inlined_call_operand.vmem [shape: f32[4,1], index: 2, kind: input, shape index: {}]
  %s3 = inlined_call_operand.vmem [shape: f32[4,4], index: 3, kind: input, shape index: {}]
  %s4 = inlined_call_operand.vmem [shape: f32[4,1], index: 4, kind: input, shape index: {}]
  %s5 = inlined_call_operand.vmem [shape: f32[2,4,256], index: 5, kind: output, shape index: {}]
  %s6 = sld [smem:[#allocation0]]
  $region53: #{channel_squeeze_forward.1} parent=0
    _
  %s8 = ssub.s32 1, %s6
  %s9 = scalar_select 0, %s8, %s6
  loop: start=0, step=1, limit=4
  $region2: #{channel_squeeze_forward.1} parent=0 // loop_pre_header
    _
  $region3: #{channel_squeeze_forward.1} parent=0 // loop_header
    %s11 = sphi 0, %s15
    %p12 = scmp.ge.s32.totalorder %s11, 4
    %s18 = sphi 0, %s30
    %s19 = sphi 0, %s26
    %s20 = sphi 0, %s18
    %s21 = sphi 0, %s19
    %s22 = sphi 0, %s20
    %s23 = sphi 0, %s21
    %s35 = sphi 0, %s37
    %s38 = sphi 0, %s35
    %s39 = sphi 0, %s38
    %s55 = sphi 0, %s39
    %s59 = sphi 0, %s59
    %s61 = sphi 0, %s59
    %s62 = sphi 0, %s61
    %s76 = sphi 0, %s62
    %s80 = sphi 0, %s80
    %s82 = sphi 0, %s80
    %s83 = sphi 0, %s82
    %s97 = sphi 0, %s83
    %s101 = sphi 0, %s101
    %s103 = sphi 0, %s101
    %s104 = sphi 0, %s103
    %s118 = sphi 0, %s104
    %s122 = sphi 0, %s122
    %s124 = sphi 0, %s122
    %s125 = sphi 0, %s124
    %s139 = sphi 0, %s125
    %s147 = sphi 0, %s149
    %s150 = sphi 0, %s147
    %s151 = sphi 0, %s150
    %s167 = sphi 0, %s151
  $region4: #{channel_squeeze_forward.1} parent=0 // loop_header_branch
    %14 = sbr.rel (%p12) target = $region8
  $region5: #{channel_squeeze_forward.1} parent=0 // loop_body
    %s16 = ssub.s32 %s11, 1
    %s17 = ssub.s32 %s11, 2
    %s24 = sadd.s32 1, %s19
    %p25 = scmp.ge.s32.totalorder %s24, 1
    %s26 = scalar_select %p25, 0, %s24
    %s27 = sadd.s32 1, %s18
    %s28 = scalar_select %p25, %s27, %s18
    %p29 = scmp.ge.s32.totalorder %s28, 2
    %s30 = scalar_select %p29, 0, %s28
    %s31 = ssub.s32 %s18, %s30
    %s32 = ssub.s32 %s19, %s26
    %s33 = sor.u32 %s31, %s32
    %p34 = scmp.eq.s32.totalorder %s33, 0
    %s36 = sadd.s32 %s35, 1
    %s37 = scalar_select %p34, %s35, %s36
    %p40 = pneg %p34
    %p41 = scmp.eq.s32.totalorder %s11, 1
    %p42 = por %p40, %p41
    %p43 = scmp.ne.s32.totalorder %s35, %s38
    %p44 = scmp.eq.s32.totalorder %s11, 0
    %p45 = por %p43, %p44
    %p46 = scmp.ne.s32.totalorder %s35, %s38
    %p47 = scmp.eq.s32.totalorder %s16, 1
    %p48 = por %p46, %p47
    %p49 = scmp.ne.s32.totalorder %s38, %s39
    %p50 = scmp.eq.s32.totalorder %s16, 0
    %p51 = por %p49, %p50
    %p52 = scmp.ne.s32.totalorder %s38, %s39
    %p53 = scmp.eq.s32.totalorder %s17, 1
    %p54 = por %p52, %p53
    %p56 = scmp.ne.s32.totalorder %s39, %s55
    %p57 = scmp.eq.s32.totalorder %s17, 0
    %p58 = por %p56, %p57
    %s60 = sadd.s32 %s59, 1
    %p63 = scmp.eq.s32.totalorder %s11, 1
    %p64 = scmp.ne.s32.totalorder %s59, %s61
    %p65 = scmp.eq.s32.totalorder %s11, 0
    %p66 = por %p64, %p65
    %p67 = scmp.ne.s32.totalorder %s59, %s61
    %p68 = scmp.eq.s32.totalorder %s16, 1
    %p69 = por %p67, %p68
    %p70 = scmp.ne.s32.totalorder %s61, %s62
    %p71 = scmp.eq.s32.totalorder %s16, 0
    %p72 = por %p70, %p71
    %p73 = scmp.ne.s32.totalorder %s61, %s62
    %p74 = scmp.eq.s32.totalorder %s17, 1
    %p75 = por %p73, %p74
    %p77 = scmp.ne.s32.totalorder %s62, %s76
    %p78 = scmp.eq.s32.totalorder %s17, 0
    %p79 = por %p77, %p78
    %s81 = sadd.s32 %s80, 1
    %p84 = scmp.eq.s32.totalorder %s11, 1
    %p85 = scmp.ne.s32.totalorder %s80, %s82
    %p86 = scmp.eq.s32.totalorder %s11, 0
    %p87 = por %p85, %p86
    %p88 = scmp.ne.s32.totalorder %s80, %s82
    %p89 = scmp.eq.s32.totalorder %s16, 1
    %p90 = por %p88, %p89
    %p91 = scmp.ne.s32.totalorder %s82, %s83
    %p92 = scmp.eq.s32.totalorder %s16, 0
    %p93 = por %p91, %p92
    %p94 = scmp.ne.s32.totalorder %s82, %s83
    %p95 = scmp.eq.s32.totalorder %s17, 1
    %p96 = por %p94, %p95
    %p98 = scmp.ne.s32.totalorder %s83, %s97
    %p99 = scmp.eq.s32.totalorder %s17, 0
    %p100 = por %p98, %p99
    %s102 = sadd.s32 %s101, 1
    %p105 = scmp.eq.s32.totalorder %s11, 1
    %p106 = scmp.ne.s32.totalorder %s101, %s103
    %p107 = scmp.eq.s32.totalorder %s11, 0
    %p108 = por %p106, %p107
    %p109 = scmp.ne.s32.totalorder %s101, %s103
    %p110 = scmp.eq.s32.totalorder %s16, 1
    %p111 = por %p109, %p110
    %p112 = scmp.ne.s32.totalorder %s103, %s104
    %p113 = scmp.eq.s32.totalorder %s16, 0
    %p114 = por %p112, %p113
    %p115 = scmp.ne.s32.totalorder %s103, %s104
    %p116 = scmp.eq.s32.totalorder %s17, 1
    %p117 = por %p115, %p116
    %p119 = scmp.ne.s32.totalorder %s104, %s118
    %p120 = scmp.eq.s32.totalorder %s17, 0
    %p121 = por %p119, %p120
    %s123 = sadd.s32 %s122, 1
    %p126 = scmp.eq.s32.totalorder %s11, 1
    %p127 = scmp.ne.s32.totalorder %s122, %s124
    %p128 = scmp.eq.s32.totalorder %s11, 0
    %p129 = por %p127, %p128
    %p130 = scmp.ne.s32.totalorder %s122, %s124
    %p131 = scmp.eq.s32.totalorder %s16, 1
    %p132 = por %p130, %p131
    %p133 = scmp.ne.s32.totalorder %s124, %s125
    %p134 = scmp.eq.s32.totalorder %s16, 0
    %p135 = por %p133, %p134
    %p136 = scmp.ne.s32.totalorder %s124, %s125
    %p137 = scmp.eq.s32.totalorder %s17, 1
    %p138 = por %p136, %p137
    %p140 = scmp.ne.s32.totalorder %s125, %s139
    %p141 = scmp.eq.s32.totalorder %s17, 0
    %p142 = por %p140, %p141
    %s143 = ssub.s32 %s18, %s30
    %s144 = ssub.s32 %s19, %s26
    %s145 = sor.u32 %s143, %s144
    %p146 = scmp.eq.s32.totalorder %s145, 0
    %s148 = sadd.s32 %s147, 1
    %s149 = scalar_select %p146, %s147, %s148
    %p152 = pneg %p146
    %p153 = scmp.eq.s32.totalorder %s11, 1
    %p154 = por %p152, %p153
    %p155 = scmp.ne.s32.totalorder %s147, %s150
    %p156 = scmp.eq.s32.totalorder %s11, 0
    %p157 = por %p155, %p156
    %p158 = scmp.ne.s32.totalorder %s147, %s150
    %p159 = scmp.eq.s32.totalorder %s16, 1
    %p160 = por %p158, %p159
    %p161 = scmp.ne.s32.totalorder %s150, %s151
    %p162 = scmp.eq.s32.totalorder %s16, 0
    %p163 = por %p161, %p162
    %p164 = scmp.ne.s32.totalorder %s150, %s151
    %p165 = scmp.eq.s32.totalorder %s17, 1
    %p166 = por %p164, %p165
    %p168 = scmp.ne.s32.totalorder %s151, %s167
    %p169 = scmp.eq.s32.totalorder %s17, 0
    %p170 = por %p168, %p169
    %p171 = scmp.le.s32.totalorder 1, %s11
    %p172 = scmp.lt.s32.totalorder %s11, 3
    %p173 = pnand %p171, %p172
    %p174 = pneg %p173
    // Predicated region
    $region9: #{channel_squeeze_forward.1} parent=5 // pred_check
      _
    $region10: #{channel_squeeze_forward.1} parent=5 // pred_check_branch
      %176 = sbr.rel (%p173) target = $region12
    $region11: #{channel_squeeze_forward.1} parent=5 // pred_region
      %s177 = ssub.s32 %s11, 1
      // Predicated region
      $region13: #{channel_squeeze_forward.1} parent=11 // pred_check
        %p178 = pneg %p72
      $region14: #{channel_squeeze_forward.1} parent=11 // pred_check_branch
        %180 = sbr.rel (%p178) target = $region16
      $region15: #{channel_squeeze_forward.1} parent=11 // pred_region
        _
      $region16: #{channel_squeeze_forward.1} parent=11 // pred_fallthru
        _
      // Predicated region
      $region17: #{channel_squeeze_forward.1} parent=11 // pred_check
        %p181 = pneg %p93
      $region18: #{channel_squeeze_forward.1} parent=11 // pred_check_branch
        %183 = sbr.rel (%p181) target = $region20
      $region19: #{channel_squeeze_forward.1} parent=11 // pred_region
        _
      $region20: #{channel_squeeze_forward.1} parent=11 // pred_fallthru
        _
      // Predicated region
      $region21: #{channel_squeeze_forward.1} parent=11 // pred_check
        %p184 = pneg %p114
      $region22: #{channel_squeeze_forward.1} parent=11 // pred_check_branch
        %186 = sbr.rel (%p184) target = $region24
      $region23: #{channel_squeeze_forward.1} parent=11 // pred_region
        _
      $region24: #{channel_squeeze_forward.1} parent=11 // pred_fallthru
        _
      // Predicated region
      $region25: #{channel_squeeze_forward.1} parent=11 // pred_check
        %p187 = pneg %p135
      $region26: #{channel_squeeze_forward.1} parent=11 // pred_check_branch
        %189 = sbr.rel (%p187) target = $region28
      $region27: #{channel_squeeze_forward.1} parent=11 // pred_region
        _
      $region28: #{channel_squeeze_forward.1} parent=11 // pred_fallthru
        _
    $region12: #{channel_squeeze_forward.1} parent=5 // pred_fallthru
      _
    %p190 = scmp.lt.s32.totalorder %s11, 2
    // Predicated region
    $region29: #{channel_squeeze_forward.1} parent=5 // pred_check
      %p191 = pneg %p190
    $region30: #{channel_squeeze_forward.1} parent=5 // pred_check_branch
      %193 = sbr.rel (%p191) target = $region32
    $region31: #{channel_squeeze_forward.1} parent=5 // pred_region
      // Predicated region
      $region33: #{channel_squeeze_forward.1} parent=31 // pred_check
        %p194 = pneg %p45
      $region34: #{channel_squeeze_forward.1} parent=31 // pred_check_branch
        %196 = sbr.rel (%p194) target = $region36
      $region35: #{channel_squeeze_forward.1} parent=31 // pred_region
        %s197 = smul.u32 2, %s19
        %p198 = scmp.lt.s32.totalorder %s18, 1
        %s199 = scalar_select %p198, %s18, 1
        %p200 = scmp.lt.s32.totalorder %s197, 1
        %s201 = scalar_select %p200, %s197, 1
        %s202 = smul.addr %s199, 4
        %s203 = sadd.s32 %s201, %s202
        %s204 = smul.addr %s203, 8
        %s205 = scalar_lea.vmem %s0, %s204
        %s206 = smul.u32 2, %s19
      $region36: #{channel_squeeze_forward.1} parent=31 // pred_fallthru
        _
    $region32: #{channel_squeeze_forward.1} parent=5 // pred_fallthru
      _
    %p207 = scmp.le.s32.totalorder 1, %s11
    %p208 = scmp.lt.s32.totalorder %s11, 3
    %p209 = pnand %p207, %p208
    %p210 = pneg %p209
    // Predicated region
    $region37: #{channel_squeeze_forward.1} parent=5 // pred_check
      _
    $region38: #{channel_squeeze_forward.1} parent=5 // pred_check_branch
      %212 = sbr.rel (%p209) target = $region40
    $region39: #{channel_squeeze_forward.1} parent=5 // pred_region
      %s213 = ssub.s32 %s11, 1
      %s214 = smul.u32 2, %s21
      %p215 = scmp.lt.s32.totalorder %s20, 1
      %s216 = scalar_select %p215, %s20, 1
      %p217 = scmp.lt.s32.totalorder %s214, 1
      %s218 = scalar_select %p217, %s214, 1
      %s219 = smul.addr %s216, 4
      %s220 = sadd.s32 %s218, %s219
      %s221 = smul.addr %s220, 8
      %s222 = scalar_lea.vmem %s0, %s221
      %p223 = pneg %p51
      %p224 = pneg %p48
      %p225 = pneg %p72
      %p226 = pneg %p69
      %p227 = pneg %p93
      %p228 = pneg %p90
      %p229 = pneg %p114
      %p230 = pneg %p111
      %p231 = pneg %p135
      %p232 = pneg %p132
      %p233 = pneg %p163
      %p234 = pneg %p160
      %s235 = smul.u32 2, %s21
      %p236 = scmp.lt.s32.totalorder %s20, 1
      %s237 = scalar_select %p236, %s20, 1
      %p238 = scmp.lt.s32.totalorder %s235, 1
      %s239 = scalar_select %p238, %s235, 1
      %s240 = smul.addr %s237, 2
      %s241 = sadd.s32 %s239, %s240
      %s242 = smul.addr %s241, 4
      %s243 = scalar_lea.vmem %s5, %s242
      %s244 = smul.u32 2, %s21
      %p245 = scmp.lt.s32.totalorder %s20, 1
      %s246 = scalar_select %p245, %s20, 1
      %p247 = scmp.lt.s32.totalorder %s244, 1
      %s248 = scalar_select %p247, %s244, 1
      %s249 = smul.addr %s246, 4
      %s250 = sadd.s32 %s248, %s249
      %s251 = smul.addr %s250, 8
      %s252 = scalar_lea.vmem %s0, %s251
      %s253 = smul.u32 2, %s21
      %s254 = smul.u32 2, %s21
      %p255 = scmp.lt.s32.totalorder %s20, 1
      %s256 = scalar_select %p255, %s20, 1
      %p257 = scmp.lt.s32.totalorder %s254, 1
      %s258 = scalar_select %p257, %s254, 1
      %s259 = smul.addr %s256, 2
      %s260 = sadd.s32 %s258, %s259
      %s261 = smul.addr %s260, 4
      %s262 = scalar_lea.vmem %s5, %s261
      %s263 = smul.u32 2, %s21
      %v264 = vld [vmem:[%s252] sm:$0xff]
      %v265 = vld [vmem:[%s252 + $0x8] sm:$0xff]
      %v266 = vld [vmem:[%s252 + $0x10] sm:$0xff]
      %v267 = vld [vmem:[%s252 + $0x18] sm:$0xff]
      %v268 = vld [vmem:[%s1] sm:$0xf]
      %v269 = vld [vmem:[%s2] sm:$0xf]
      %271 = vset.pattern.permute.xlu0 0
      %272 = vperm.xlu0 %271, %v269
      %v273 = vpop.permute.xlu0 %272
      %vm275 = vcmask 130048
      %v277 = vsel %vm275, %v268, 0
      %279 = vmatprep.subr.mxu0 %v265
      %280 = vmatpush1.msra.mxu0 %v264
      %281 = vmatprep.subr.mxu0 %v267
      %282 = vmatpush1.msra.mxu0 %v266
      %283 = vmatprep.subr.mxu0 0.0
      %284 = vmatpush1.msra.mxu0 0.0
      %285 = vmatprep.subr.mxu0 0.0
      %286 = vmatpush1.msra.mxu0 0.0
      %287 = vmatprep.subr.mxu0 0.0
      %288 = vmatpush1.msra.mxu0 0.0
      %289 = vmatprep.subr.mxu0 0.0
      %290 = vmatpush1.msra.mxu0 0.0
      %291 = vmatprep.subr.mxu0 0.0
      %292 = vmatpush1.msra.mxu0 0.0
      %293 = vmatprep.subr.mxu0 0.0
      %294 = vmatpush1.msra.mxu0 0.0
      %295 = vmatprep.subr.mxu0 0.0
      %296 = vmatpush1.msra.mxu0 0.0
      %297 = vmatprep.subr.mxu0 0.0
      %298 = vmatpush1.msra.mxu0 0.0
      %299 = vmatprep.subr.mxu0 0.0
      %300 = vmatpush1.msra.mxu0 0.0
      %301 = vmatprep.subr.mxu0 0.0
      %302 = vmatpush1.msra.mxu0 0.0
      %303 = vmatprep.subr.mxu0 0.0
      %304 = vmatpush1.msra.mxu0 0.0
      %305 = vmatprep.subr.mxu0 0.0
      %306 = vmatpush1.msra.mxu0 0.0
      %307 = vmatprep.subr.mxu0 0.0
      %308 = vmatpush1.msra.mxu0 0.0
      %309 = vmatprep.subr.mxu0 0.0
      %310 = vmatpush1.msra.mxu0 0.0
      %311 = vmatprep.subr.mxu0 0.0
      %312 = vmatpush1.msra.mxu0 0.0
      %313 = vmatprep.subr.mxu0 0.0
      %314 = vmatpush1.msra.mxu0 0.0
      %315 = vmatprep.subr.mxu0 0.0
      %316 = vmatpush1.msra.mxu0 0.0
      %317 = vmatprep.subr.mxu0 0.0
      %318 = vmatpush1.msra.mxu0 0.0
      %319 = vmatprep.subr.mxu0 0.0
      %320 = vmatpush1.msra.mxu0 0.0
      %321 = vmatprep.subr.mxu0 0.0
      %322 = vmatpush1.msra.mxu0 0.0
      %323 = vmatprep.subr.mxu0 0.0
      %324 = vmatpush1.msra.mxu0 0.0
      %325 = vmatprep.subr.mxu0 0.0
      %326 = vmatpush1.msra.mxu0 0.0
      %327 = vmatprep.subr.mxu0 0.0
      %328 = vmatpush1.msra.mxu0 0.0
      %329 = vmatprep.subr.mxu0 0.0
      %330 = vmatpush1.msra.mxu0 0.0
      %331 = vmatprep.subr.mxu0 0.0
      %332 = vmatpush1.msra.mxu0 0.0
      %333 = vmatprep.subr.mxu0 0.0
      %334 = vmatpush1.msra.mxu0 0.0
      %335 = vmatprep.subr.mxu0 0.0
      %336 = vmatpush1.msra.mxu0 0.0
      %337 = vmatprep.subr.mxu0 0.0
      %338 = vmatpush1.msra.mxu0 0.0
      %339 = vmatprep.subr.mxu0 0.0
      %340 = vmatpush1.msra.mxu0 0.0
      %341 = vmatprep.subr.mxu0 0.0
      %342 = vmatpush1.msra.mxu0 0.0
      %343 = vmatprep.mubr.f32.mxu0 0.0
      %344 = vmatmul.mubr.f32.gmra.mrb[0].mxu0 %v277
      %v345 = vpop.f32.mrb[0].mxu0
      %v346 = vadd.f32 %v273, %v345
      %v347 = vpop.f32.mrb[0].mxu0
      %v348 = vadd.f32 %v273, %v347
      %349 = vdwg.mxu0
      %v350 = vmax.f32 %v346, 0.0
      %v351 = vmax.f32 %v348, 0.0
      %v352 = vld [vmem:[%s3] sm:$0xf]
      %v353 = vld [vmem:[%s4] sm:$0xf]
      %355 = vset.pattern.permute.xlu0 0
      %356 = vperm.xlu0 %355, %v353
      %v357 = vpop.permute.xlu0 %356
      %vm359 = vcmask 31744
      %v361 = vsel %vm359, %v352, 0
      %vm363 = vcmask 1043456
      %v365 = vsel %vm363, %v350, 0
      %v368 = vsel %vm363, %v351, 0
      %370 = vmatprep.subr.mxu0 %v368
      %371 = vmatpush1.msra.mxu0 %v365
      %372 = vmatprep.subr.mxu0 0.0
      %373 = vmatpush1.msra.mxu0 0.0
      %374 = vmatprep.subr.mxu0 0.0
      %375 = vmatpush1.msra.mxu0 0.0
      %376 = vmatprep.subr.mxu0 0.0
      %377 = vmatpush1.msra.mxu0 0.0
      %378 = vmatprep.subr.mxu0 0.0
      %379 = vmatpush1.msra.mxu0 0.0
      %380 = vmatprep.subr.mxu0 0.0
      %381 = vmatpush1.msra.mxu0 0.0
      %382 = vmatprep.subr.mxu0 0.0
      %383 = vmatpush1.msra.mxu0 0.0
      %384 = vmatprep.subr.mxu0 0.0
      %385 = vmatpush1.msra.mxu0 0.0
      %386 = vmatprep.subr.mxu0 0.0
      %387 = vmatpush1.msra.mxu0 0.0
      %388 = vmatprep.subr.mxu0 0.0
      %389 = vmatpush1.msra.mxu0 0.0
      %390 = vmatprep.subr.mxu0 0.0
      %391 = vmatpush1.msra.mxu0 0.0
      %392 = vmatprep.subr.mxu0 0.0
      %393 = vmatpush1.msra.mxu0 0.0
      %394 = vmatprep.subr.mxu0 0.0
      %395 = vmatpush1.msra.mxu0 0.0
      %396 = vmatprep.subr.mxu0 0.0
      %397 = vmatpush1.msra.mxu0 0.0
      %398 = vmatprep.subr.mxu0 0.0
      %399 = vmatpush1.msra.mxu0 0.0
      %400 = vmatprep.subr.mxu0 0.0
      %401 = vmatpush1.msra.mxu0 0.0
      %402 = vmatprep.subr.mxu0 0.0
      %403 = vmatpush1.msra.mxu0 0.0
      %404 = vmatprep.subr.mxu0 0.0
      %405 = vmatpush1.msra.mxu0 0.0
      %406 = vmatprep.subr.mxu0 0.0
      %407 = vmatpush1.msra.mxu0 0.0
      %408 = vmatprep.subr.mxu0 0.0
      %409 = vmatpush1.msra.mxu0 0.0
      %410 = vmatprep.subr.mxu0 0.0
      %411 = vmatpush1.msra.mxu0 0.0
      %412 = vmatprep.subr.mxu0 0.0
      %413 = vmatpush1.msra.mxu0 0.0
      %414 = vmatprep.subr.mxu0 0.0
      %415 = vmatpush1.msra.mxu0 0.0
      %416 = vmatprep.subr.mxu0 0.0
      %417 = vmatpush1.msra.mxu0 0.0
      %418 = vmatprep.subr.mxu0 0.0
      %419 = vmatpush1.msra.mxu0 0.0
      %420 = vmatprep.subr.mxu0 0.0
      %421 = vmatpush1.msra.mxu0 0.0
      %422 = vmatprep.subr.mxu0 0.0
      %423 = vmatpush1.msra.mxu0 0.0
      %424 = vmatprep.subr.mxu0 0.0
      %425 = vmatpush1.msra.mxu0 0.0
      %426 = vmatprep.subr.mxu0 0.0
      %427 = vmatpush1.msra.mxu0 0.0
      %428 = vmatprep.subr.mxu0 0.0
      %429 = vmatpush1.msra.mxu0 0.0
      %430 = vmatprep.subr.mxu0 0.0
      %431 = vmatpush1.msra.mxu0 0.0
      %432 = vmatprep.subr.mxu0 0.0
      %433 = vmatpush1.msra.mxu0 0.0
      %434 = vmatprep.mubr.f32.mxu0 0.0
      %435 = vmatmul.mubr.f32.gmra.mrb[0].mxu0 %v361
      %v436 = vpop.f32.mrb[0].mxu0
      %v437 = vadd.f32 %v357, %v436
      %v438 = vpop.f32.mrb[0].mxu0
      %v439 = vadd.f32 %v357, %v438
      %440 = vdwg.mxu0
      %v441 = vmax.f32 %v437, 0.0
      %v442 = vmax.f32 %v439, 0.0
      %v445 = vcombine.low %v441, %v442
      %447 = vst [vmem:[%s262] sm:$0xff] %v445
      %s448 = smul.u32 2, %s21
      %p449 = scmp.lt.s32.totalorder %s20, 1
      %s450 = scalar_select %p449, %s20, 1
      %p451 = scmp.lt.s32.totalorder %s448, 1
      %s452 = scalar_select %p451, %s448, 1
      %s453 = smul.addr %s450, 2
      %s454 = sadd.s32 %s452, %s453
      %s455 = smul.addr %s454, 4
      %s456 = scalar_lea.vmem %s5, %s455
      // Predicated region
      $region41: #{channel_squeeze_forward.1} parent=39 // pred_check
        %p457 = pneg %p160
      $region42: #{channel_squeeze_forward.1} parent=39 // pred_check_branch
        %459 = sbr.rel (%p457) target = $region44
      $region43: #{channel_squeeze_forward.1} parent=39 // pred_region
        %s460 = smul.u32 2, %s21
      $region44: #{channel_squeeze_forward.1} parent=39 // pred_fallthru
        _
    $region40: #{channel_squeeze_forward.1} parent=5 // pred_fallthru
      _
    %p461 = scmp.le.s32.totalorder 2, %s11
    // Predicated region
    $region45: #{channel_squeeze_forward.1} parent=5 // pred_check
      %p462 = pneg %p461
    $region46: #{channel_squeeze_forward.1} parent=5 // pred_check_branch
      %464 = sbr.rel (%p462) target = $region48
    $region47: #{channel_squeeze_forward.1} parent=5 // pred_region
      %s465 = ssub.s32 %s11, 2
      // Predicated region
      $region49: #{channel_squeeze_forward.1} parent=47 // pred_check
        %p466 = pneg %p166
      $region50: #{channel_squeeze_forward.1} parent=47 // pred_check_branch
        %468 = sbr.rel (%p466) target = $region52
      $region51: #{channel_squeeze_forward.1} parent=47 // pred_region
        %s469 = smul.u32 2, %s23
        %p470 = scmp.lt.s32.totalorder %s22, 1
        %s471 = scalar_select %p470, %s22, 1
        %p472 = scmp.lt.s32.totalorder %s469, 1
        %s473 = scalar_select %p472, %s469, 1
        %s474 = smul.addr %s471, 2
        %s475 = sadd.s32 %s473, %s474
        %s476 = smul.addr %s475, 4
        %s477 = scalar_lea.vmem %s5, %s476
      $region52: #{channel_squeeze_forward.1} parent=47 // pred_fallthru
        _
    $region48: #{channel_squeeze_forward.1} parent=5 // pred_fallthru
      _
  $region6: #{channel_squeeze_forward.1} parent=0 // loop_footer
    %s15 = sadd.s32 1, %s11
  $region7: #{channel_squeeze_forward.1} parent=0 // loop_footer_branch
    %10 = sbr.rel target = $region3
  $region8: #{channel_squeeze_forward.1} parent=0 // loop_exit
    _

</llo_original>
